<compile_context>
chip_gen: v7x
topology: tpu7x:2x2x1
jax: 0.10.0
libtpu: 0.0.40
codegen_flags: <defaults>
</compile_context>

<pallas_src>
import jax
import jax.numpy as jnp
from jax.experimental import pallas as pl
from jax.experimental.pallas import tpu as pltpu


def _linear_kernel(x_ref, w_ref, b_ref, o_ref):
    # x_ref: [tm, H] (streamed)     w_ref: [H, T] (resident, pre-transposed)
    # b_ref: [1, T] f32 (resident)  o_ref: [tm, T]
    acc = jnp.dot(x_ref[...], w_ref[...], preferred_element_type=jnp.float32)
    o_ref[...] = (acc + b_ref[...]).astype(o_ref.dtype)


def _round_up(n, m):
    return ((n + m - 1) // m) * m


def _pick_tiling(M, H, T, cd_bytes, out_bytes, tile_m):
    """Generation-aware tile size + VMEM limit."""
    try:
        vmem_cap = int(pltpu.get_tpu_info().vmem_capacity_bytes)
    except Exception:
        vmem_cap = 64 * 1024 * 1024            # conservative: v7x per-core VMEM
    big_vmem = vmem_cap >= 100 * 1024 * 1024   # v5e/v6e: 128 MiB, v7x: 64 MiB
    vmem_limit = min(int(0.75 * vmem_cap), 96 * 1024 * 1024)

    if tile_m is not None:
        tm = min(_round_up(tile_m, 8), _round_up(M, 8))
    else:
        # Budget: double-buffered x/out tiles + double-buffered resident weight/bias.
        resident = 2 * (H * T * cd_bytes + T * 4)
        per_row = 2 * (H * cd_bytes + T * out_bytes)
        budget_tm = max(8, ((vmem_limit - resident) // per_row) // 8 * 8)
        max_tm = 1024 if big_vmem else 512     # >=512 tiles ~85% of HBM roofline
        tm = min(max_tm, budget_tm, _round_up(M, 8))
        # v7x has 2 TensorCores: ensure at least 2 grid blocks when M allows it.
        if not big_vmem and M > 16 and pl.cdiv(M, tm) < 2:
            tm = _round_up(pl.cdiv(M, 2), 8)
    return tm, vmem_limit


def anomaly_detector_finetuner_forward(log_embeddings, weight, bias, *,
                                       compute_dtype=jnp.bfloat16,
                                       tile_m=None,
                                       force_pallas=False):
    """ff1(log_embeddings).

    log_embeddings: [..., H]   weight: [T, H] (PyTorch layout)   bias: [T]
    returns [..., T] in log_embeddings.dtype.
    """
    orig_dtype = log_embeddings.dtype
    *lead, H = log_embeddings.shape
    T = weight.shape[0]
    M = 1
    for d in lead:
        M *= d

    cd = jnp.dtype(orig_dtype) if compute_dtype is None else jnp.dtype(compute_dtype)

    # Tiny problems: kernel launch + pipeline prologue dominates; use XLA's dense.
    if not force_pallas and M * H < (1 << 18):
        out = jnp.einsum("...h,th->...t",
                         log_embeddings.astype(cd), weight.astype(cd),
                         preferred_element_type=jnp.float32)
        return (out + bias.astype(jnp.float32)).astype(orig_dtype)

    x2d = log_embeddings.reshape(M, H).astype(cd)       # streamed activations
    w_t = weight.T.astype(cd)                           # one-time [H, T] relayout
    b2d = bias.reshape(1, T).astype(jnp.float32)        # resident bias, kept f32

    cd_bytes = jnp.dtype(cd).itemsize
    out_bytes = jnp.dtype(orig_dtype).itemsize
    tm, vmem_limit = _pick_tiling(M, H, T, cd_bytes, out_bytes, tile_m)
    grid_m = pl.cdiv(M, tm)    # ragged last tile handled by Pallas masking: no pad/slice copies

    cost = pl.CostEstimate(
        flops=2 * M * H * T,
        transcendentals=0,
        bytes_accessed=M * H * cd_bytes + H * T * cd_bytes + T * 4 + M * T * out_bytes,
    )

    out2d = pl.pallas_call(
        _linear_kernel,
        out_shape=jax.ShapeDtypeStruct((M, T), orig_dtype),
        grid_spec=pl.GridSpec(
            grid=(grid_m,),
            in_specs=[
                pl.BlockSpec((tm, H), lambda i: (i, 0)),   # streamed x tiles
                pl.BlockSpec((H, T), lambda i: (0, 0)),    # resident weight [H, T]
                pl.BlockSpec((1, T), lambda i: (0, 0)),    # resident bias
            ],
            out_specs=pl.BlockSpec((tm, T), lambda i: (i, 0)),
        ),
        compiler_params=pltpu.CompilerParams(
            dimension_semantics=("parallel",),
            vmem_limit_bytes=vmem_limit,
        ),
        cost_estimate=cost,
    )(x2d, w_t, b2d)

    return out2d.reshape(tuple(lead) + (T,))


if __name__ == "__main__":
    # Small shapes implied by the module: token embeddings [B, S, hidden]
    B, S, HIDDEN, TARGET = 2, 8, 32, 8

    key = jax.random.PRNGKey(0)
    k_x, k_w, k_b = jax.random.split(key, 3)

    log_embeddings = jax.random.normal(k_x, (B, S, HIDDEN), dtype=jnp.float32)

    # Deterministic nn.Linear-style init: U(-1/sqrt(H), 1/sqrt(H))
    bound = 1.0 / (HIDDEN ** 0.5)
    weight = jax.random.uniform(k_w, (TARGET, HIDDEN), dtype=jnp.float32,
                                minval=-bound, maxval=bound)
    bias = jax.random.uniform(k_b, (TARGET,), dtype=jnp.float32,
                              minval=-bound, maxval=bound)

    # Pure-JAX reference
    ref = jnp.einsum("bsh,th->bst", log_embeddings, weight) + bias

    # Exact path (f32 streaming) — tight tolerance.
    out_f32 = anomaly_detector_finetuner_forward(
        log_embeddings, weight, bias, compute_dtype=None, force_pallas=True)
    out_f32 = jax.block_until_ready(out_f32)
    assert out_f32.shape == (B, S, TARGET)
    assert jnp.allclose(out_f32, ref, atol=1e-5, rtol=1e-5)

    # Default path (bf16 streaming, f32 accumulate) — loosened tolerance for bf16 quantization.
    out_bf16 = anomaly_detector_finetuner_forward(
        log_embeddings, weight, bias, force_pallas=True)
    out_bf16 = jax.block_until_ready(out_bf16)
    assert out_bf16.shape == (B, S, TARGET)
    assert jnp.allclose(out_bf16, ref, atol=2e-2, rtol=2e-2)

    print("KERNEL_OK")
</pallas_src>

<mosaic_0001>
module attributes {stable_mosaic.version = 11 : i64} {
  func.func @_linear_kernel(%arg0: i32, %arg1: memref<16x32xf32, #tpu.memory_space<vmem>>, %arg2: memref<32x8xf32, #tpu.memory_space<vmem>>, %arg3: memref<1x8xf32, #tpu.memory_space<vmem>>, %arg4: memref<16x8xf32, #tpu.memory_space<vmem>>) attributes {dimension_semantics = [#tpu.dimension_semantics<parallel>], iteration_bounds = array<i64: 1>, scalar_prefetch = 0 : i64, scratch_operands = 0 : i64, tpu.core_type = #tpu.core_type<tc>, window_params = [{transform_indices = @transform_0, window_bounds = array<i64: 16, 32>}, {pipeline_mode = #tpu.pipeline_mode<synchronous>, transform_indices = @transform_1, window_bounds = array<i64: 32, 8>}, {pipeline_mode = #tpu.pipeline_mode<synchronous>, transform_indices = @transform_2, window_bounds = array<i64: 1, 8>}, {transform_indices = @transform_3, window_bounds = array<i64: 16, 8>}]} {
    %c0 = arith.constant 0 : index
    %c0_0 = arith.constant 0 : index
    %0 = vector.load %arg1[%c0, %c0_0] : memref<16x32xf32, #tpu.memory_space<vmem>>, vector<16x32xf32>
    %c0_1 = arith.constant 0 : index
    %c0_2 = arith.constant 0 : index
    %1 = vector.load %arg2[%c0_1, %c0_2] : memref<32x8xf32, #tpu.memory_space<vmem>>, vector<32x8xf32>
    %cst = arith.constant dense<0.000000e+00> : vector<16x8xf32>
    %2 = tpu.matmul %0, %1, %cst {dimension_numbers = #tpu.dot_dimension_numbers<[1], [0], [0], [1], [0, 0, 1, 1], [], []>} : vector<16x32xf32>, vector<32x8xf32>, vector<16x8xf32> -> vector<16x8xf32>
    %c0_3 = arith.constant 0 : index
    %c0_4 = arith.constant 0 : index
    %3 = vector.load %arg3[%c0_3, %c0_4] : memref<1x8xf32, #tpu.memory_space<vmem>>, vector<1x8xf32>
    %4 = vector.broadcast %3 : vector<1x8xf32> to vector<16x8xf32>
    %5 = arith.addf %2, %4 : vector<16x8xf32>
    %c0_5 = arith.constant 0 : index
    %c0_6 = arith.constant 0 : index
    %6 = vector.load %arg4[%c0_5, %c0_6] : memref<16x8xf32, #tpu.memory_space<vmem>>, vector<16x8xf32>
    tpu.vector_store %arg4[%c0_5, %c0_6], %5 {strides = array<i32>} : memref<16x8xf32, #tpu.memory_space<vmem>>, vector<16x8xf32>,
    return
  }
  func.func @transform_0(%arg0: i32) -> (i32, i32) {
    %c0_i32 = arith.constant 0 : i32
    %c0_i32_0 = arith.constant 0 : i32
    return %arg0, %c0_i32 : i32, i32
  }
  func.func @transform_1(%arg0: i32) -> (i32, i32) {
    %c0_i32 = arith.constant 0 : i32
    %c0_i32_0 = arith.constant 0 : i32
    %c0_i32_1 = arith.constant 0 : i32
    return %c0_i32, %c0_i32_0 : i32, i32
  }
  func.func @transform_2(%arg0: i32) -> (i32, i32) {
    %c0_i32 = arith.constant 0 : i32
    %c0_i32_0 = arith.constant 0 : i32
    %c0_i32_1 = arith.constant 0 : i32
    return %c0_i32, %c0_i32_0 : i32, i32
  }
  func.func @transform_3(%arg0: i32) -> (i32, i32) {
    %c0_i32 = arith.constant 0 : i32
    %c0_i32_0 = arith.constant 0 : i32
    return %arg0, %c0_i32 : i32, i32
  }
}

</mosaic_0001>

<llo_original>
// kernel: tpu_custom_call.1
$region0: #{tpu_custom_call.1}
  #allocation0 [shape = 'u32[]', space=smem, size = 0x4, offset = 0x4, fixed_abs, tag = 'smem constant byte address 0x4 - core index']
  #allocation1 [shape = 'u32[144,128]{1,0:T(1,128)}', space=vmem, size = 0x12000, scoped, tag = 'internal scratch']
  %s0 = inlined_call_operand.vmem [shape: f32[16,32], index: 0, kind: input, shape index: {}]
  %s1 = inlined_call_operand.vmem [shape: f32[32,8], index: 1, kind: input, shape index: {}]
  %s2 = inlined_call_operand.vmem [shape: f32[1,8], index: 2, kind: input, shape index: {}]
  %s3 = inlined_call_operand.vmem [shape: f32[16,8], index: 3, kind: output, shape index: {}]
  %s4 = sld [smem:[#allocation0]]
  $region22: #{tpu_custom_call.1} parent=0
    _
  %s6 = ssub.s32 1, %s4
  %s7 = scalar_select 0, %s6, %s4
  // Predicated region
  $region2: #{tpu_custom_call.1} parent=0 // pred_check
    _
  $region3: #{tpu_custom_call.1} parent=0 // pred_check_branch
    %9 = sbr.rel (0) target = $region5
  $region4: #{tpu_custom_call.1} parent=0 // pred_region
    _
  $region5: #{tpu_custom_call.1} parent=0 // pred_fallthru
    _
  // Predicated region
  $region6: #{tpu_custom_call.1} parent=0 // pred_check
    _
  $region7: #{tpu_custom_call.1} parent=0 // pred_check_branch
    %11 = sbr.rel (0) target = $region9
  $region8: #{tpu_custom_call.1} parent=0 // pred_region
    _
  $region9: #{tpu_custom_call.1} parent=0 // pred_fallthru
    _
  // Predicated region
  $region10: #{tpu_custom_call.1} parent=0 // pred_check
    _
  $region11: #{tpu_custom_call.1} parent=0 // pred_check_branch
    %13 = sbr.rel (0) target = $region13
  $region12: #{tpu_custom_call.1} parent=0 // pred_region
    _
  $region13: #{tpu_custom_call.1} parent=0 // pred_fallthru
    _
  %v14 = vld [vmem:[%s0] sm:$0xff]
  %v15 = vld [vmem:[%s0 + $0x8] sm:$0xff]
  %v16 = vld [vmem:[%s1] sm:$0xff]
  %v17 = vld [vmem:[%s1 + $0x8] sm:$0xff]
  %v18 = vld [vmem:[%s1 + $0x10] sm:$0xff]
  %v19 = vld [vmem:[%s1 + $0x18] sm:$0xff]
  %v20 = vld [vmem:[%s2] sm:$0x1]
  %v22 = vlaneseq
  %v23 = vshrl.u32 %v22, 7
  %v24 = vsub.s32 0, %v23
  %v25 = vrot.slane %v20, %v24
  %vm27 = vcmask 261120
  %v29 = vsel %vm27, %v14, 0
  %v32 = vsel %vm27, %v15, 0
  %34 = vmatprep.subr.mxu0 0.0
  %35 = vmatpush1.msra.mxu0 %v16
  %36 = vmatprep.subr.mxu0 0.0
  %37 = vmatpush1.msra.mxu0 %v17
  %38 = vmatprep.subr.mxu0 0.0
  %39 = vmatpush1.msra.mxu0 %v18
  %40 = vmatprep.subr.mxu0 0.0
  %41 = vmatpush1.msra.mxu0 %v19
  %42 = vmatprep.subr.mxu0 0.0
  %43 = vmatpush1.msra.mxu0 0.0
  %44 = vmatprep.subr.mxu0 0.0
  %45 = vmatpush1.msra.mxu0 0.0
  %46 = vmatprep.subr.mxu0 0.0
  %47 = vmatpush1.msra.mxu0 0.0
  %48 = vmatprep.subr.mxu0 0.0
  %49 = vmatpush1.msra.mxu0 0.0
  %50 = vmatprep.subr.mxu0 0.0
  %51 = vmatpush1.msra.mxu0 0.0
  %52 = vmatprep.subr.mxu0 0.0
  %53 = vmatpush1.msra.mxu0 0.0
  %54 = vmatprep.subr.mxu0 0.0
  %55 = vmatpush1.msra.mxu0 0.0
  %56 = vmatprep.subr.mxu0 0.0
  %57 = vmatpush1.msra.mxu0 0.0
  %58 = vmatprep.subr.mxu0 0.0
  %59 = vmatpush1.msra.mxu0 0.0
  %60 = vmatprep.subr.mxu0 0.0
  %61 = vmatpush1.msra.mxu0 0.0
  %62 = vmatprep.subr.mxu0 0.0
  %63 = vmatpush1.msra.mxu0 0.0
  %64 = vmatprep.subr.mxu0 0.0
  %65 = vmatpush1.msra.mxu0 0.0
  %66 = vmatprep.subr.mxu0 0.0
  %67 = vmatpush1.msra.mxu0 0.0
  %68 = vmatprep.subr.mxu0 0.0
  %69 = vmatpush1.msra.mxu0 0.0
  %70 = vmatprep.subr.mxu0 0.0
  %71 = vmatpush1.msra.mxu0 0.0
  %72 = vmatprep.subr.mxu0 0.0
  %73 = vmatpush1.msra.mxu0 0.0
  %74 = vmatprep.subr.mxu0 0.0
  %75 = vmatpush1.msra.mxu0 0.0
  %76 = vmatprep.subr.mxu0 0.0
  %77 = vmatpush1.msra.mxu0 0.0
  %78 = vmatprep.subr.mxu0 0.0
  %79 = vmatpush1.msra.mxu0 0.0
  %80 = vmatprep.subr.mxu0 0.0
  %81 = vmatpush1.msra.mxu0 0.0
  %82 = vmatprep.subr.mxu0 0.0
  %83 = vmatpush1.msra.mxu0 0.0
  %84 = vmatprep.subr.mxu0 0.0
  %85 = vmatpush1.msra.mxu0 0.0
  %86 = vmatprep.subr.mxu0 0.0
  %87 = vmatpush1.msra.mxu0 0.0
  %88 = vmatprep.subr.mxu0 0.0
  %89 = vmatpush1.msra.mxu0 0.0
  %90 = vmatprep.subr.mxu0 0.0
  %91 = vmatpush1.msra.mxu0 0.0
  %92 = vmatprep.subr.mxu0 0.0
  %93 = vmatpush1.msra.mxu0 0.0
  %94 = vmatprep.subr.mxu0 0.0
  %95 = vmatpush1.msra.mxu0 0.0
  %96 = vmatprep.subr.mxu0 0.0
  %97 = vmatpush1.msra.mxu0 0.0
  %98 = vmatprep.mubr.f32.mxu0 0.0
  %99 = vmatmul.mubr.f32.gmra.mrb[0].mxu0 %v29
  %v100 = vpop.f32.mrb[0].mxu0
  %v101 = vadd.f32 %v25, %v100
  %v102 = vpop.f32.mrb[0].mxu0
  %103 = vmatprep.mubr.f32.mxu0 0.0
  %104 = vmatmul.mubr.f32.gmra.mrb[0].mxu0 %v32
  %v105 = vpop.f32.mrb[0].mxu0
  %v106 = vadd.f32 %v25, %v105
  %v107 = vpop.f32.mrb[0].mxu0
  %108 = vdwg.mxu0
  %vm109 = vcmask 64512
  %110 = vst.msk [vmem:[%s3] sm:$0xff] %vm109, %v101
  %111 = vst.msk [vmem:[%s3 + $0x8] sm:$0xff] %vm109, %v106
  // Predicated region
  $region14: #{tpu_custom_call.1} parent=0 // pred_check
    _
  $region15: #{tpu_custom_call.1} parent=0 // pred_check_branch
    %113 = sbr.rel (0) target = $region17
  $region16: #{tpu_custom_call.1} parent=0 // pred_region
    _
  $region17: #{tpu_custom_call.1} parent=0 // pred_fallthru
    _
  // Predicated region
  $region18: #{tpu_custom_call.1} parent=0 // pred_check
    _
  $region19: #{tpu_custom_call.1} parent=0 // pred_check_branch
    %115 = sbr.rel (0) target = $region21
  $region20: #{tpu_custom_call.1} parent=0 // pred_region
    _
  $region21: #{tpu_custom_call.1} parent=0 // pred_fallthru
    _

</llo_original>
